<compile_context>
chip_gen: v7x
topology: tpu7x:2x2x1
jax: 0.10.0
libtpu: 0.0.40
codegen_flags: <defaults>
</compile_context>

<pallas_src>
import functools

import jax
import jax.numpy as jnp
from jax.experimental import pallas as pl
from jax.experimental.pallas import tpu as pltpu

LN_EPS = 1e-5  # torch.nn.LayerNorm default eps


def _atom_fg_proj_kernel(x_ref, w1_ref, hidp_ref, w2_ref, o_ref):
    """One row tile: [Linear -> LayerNorm -> ReLU -> Linear] on P lane-packed rows.

    x_ref : (tile_m, P*d_atom)  P original rows packed along the 128-wide lane axis
    w1_ref: (d_atom, d_hid)     resident (constant index_map)
    hidp  : (4, max(d_hid,d_out)) = [b1; ln_gamma; ln_beta; b2 (zero-padded)]
    w2_ref: (d_hid, d_out)      resident
    o_ref : (tile_m, P*d_out)
    """
    d_atom = w1_ref.shape[0]
    d_hid = w1_ref.shape[1]
    d_out = w2_ref.shape[1]
    n_pack = x_ref.shape[1] // d_atom  # rows packed per lane-dense row (1 if unpacked)

    w1 = w1_ref[...]
    w2 = w2_ref[...]
    p = hidp_ref[...].astype(jnp.float32)
    b1 = p[0:1, :d_hid]
    gamma = p[1:2, :d_hid]
    beta = p[2:3, :d_hid]
    b2 = p[3:4, :d_out]
    inv_d = 1.0 / d_hid

    # Statically unrolled loop over the packed row-groups.
    for k in range(n_pack):
        xk = x_ref[:, k * d_atom:(k + 1) * d_atom]
        # Linear 1 (MXU): operands in stored dtype (bf16 goes in natively), f32 acc.
        h = jnp.dot(xk, w1, preferred_element_type=jnp.float32) + b1
        # Two-pass LayerNorm over the hidden dim; statistics stay in f32.
        mu = jnp.sum(h, axis=-1, keepdims=True) * inv_d
        c = h - mu
        var = jnp.sum(c * c, axis=-1, keepdims=True) * inv_d
        hn = c * jax.lax.rsqrt(var + LN_EPS) * gamma + beta
        # ReLU; Dropout(p=0.1) is the identity in eval mode.
        hr = jnp.maximum(hn, 0.0)
        # Linear 2 (MXU): cast activation to the weight dtype (native bf16 path), f32 acc.
        out = jnp.dot(hr.astype(w2.dtype), w2, preferred_element_type=jnp.float32) + b2
        o_ref[:, k * d_out:(k + 1) * d_out] = out.astype(o_ref.dtype)


@functools.lru_cache(maxsize=None)
def _hw_params():
    """(two_tensorcores, vmem_limit_bytes) — generation-aware with safe fallbacks."""
    kind = ""
    try:
        kind = jax.devices()[0].device_kind.lower()
    except Exception:
        pass
    two_tc = ("v7" in kind) or ("7x" in kind)
    vmem_phys = 64 * 1024 * 1024 if two_tc else 128 * 1024 * 1024
    try:
        vmem_phys = int(pltpu.get_tpu_info().vmem_capacity_bytes)
    except Exception:
        pass
    # <= 48 MiB on 64-MiB-VMEM parts (v7x), 64 MiB on 128-MiB parts (v5e/v6e).
    vmem_limit = min(64 * 1024 * 1024,
                     max(32 * 1024 * 1024, vmem_phys - 16 * 1024 * 1024))
    return two_tc, vmem_limit


def _auto_tile_m(n_rows, d_in_k, d_out_k, itemsize, two_tc):
    """Row tile targeting ~4 MiB of useful HBM traffic per grid step."""
    row_bytes = max(1, (d_in_k + d_out_k) * itemsize)
    tile = (4 * 1024 * 1024) // row_bytes
    tile = min(tile, 8192)                              # VMEM headroom for lane-padded temps
    min_grid = 8 if two_tc else 1                       # v7x: 2 TCs share the "parallel" axis
    tile = min(tile, max(8, pl.cdiv(n_rows, min_grid)))
    tile = min(tile, pl.cdiv(n_rows, 8) * 8)            # don't exceed (rounded-up) row count
    return max(8, (tile // 8) * 8)                      # sublane (8) alignment


@functools.partial(jax.jit, static_argnames=("tile_m",))
def atom_fg_projection(z, params, tile_m=None):
    """z: (B, S, d_atom) -> (B, S, d_output).  Eval-mode forward of AtomFGProjection."""
    w1, w2 = params["w1"], params["w2"]
    B, S, d_atom = z.shape
    d_hid = w1.shape[1]
    d_out = w2.shape[1]
    n_rows = B * S
    two_tc, vmem_limit = _hw_params()

    # Lane-dense row packing (free contiguous reshape): fold P rows into one
    # 128-wide row so DMAs and output stores use full 128-lane rows.
    pack = 128 // d_atom if (d_atom == d_out and d_atom < 128 and 128 % d_atom == 0) else 1
    if pack > 1 and n_rows % pack != 0:
        pack = 1  # ragged row count: unpacked fallback (still no pad/slice pass)

    rows = n_rows // pack
    x2d = z.reshape(rows, pack * d_atom)

    # Pack the small per-feature vectors into one resident (4, width) block.
    width = max(d_hid, d_out)

    def _pad_to(v):
        return v if v.shape[0] == width else jnp.pad(v, (0, width - v.shape[0]))

    hidp = jnp.stack([_pad_to(params["b1"]), _pad_to(params["ln_gamma"]),
                      _pad_to(params["ln_beta"]), _pad_to(params["b2"])])

    if tile_m is None:
        tile_m = _auto_tile_m(rows, pack * d_atom, pack * d_out,
                              jnp.dtype(z.dtype).itemsize, two_tc)
    assert tile_m % 8 == 0, "tile_m must be a multiple of 8 (sublane alignment)"

    # Non-divisible row counts: the last (partial) block is masked by Pallas
    # (reads padded with garbage, out-of-bounds writes dropped) — no extra HBM pass.
    grid = (pl.cdiv(rows, tile_m),)

    out2d = pl.pallas_call(
        _atom_fg_proj_kernel,
        out_shape=jax.ShapeDtypeStruct((rows, pack * d_out), z.dtype),
        grid_spec=pltpu.PrefetchScalarGridSpec(
            num_scalar_prefetch=0,
            grid=grid,
            in_specs=[
                pl.BlockSpec((tile_m, pack * d_atom), lambda i: (i, 0)),  # x tile (lane-dense)
                pl.BlockSpec((d_atom, d_hid), lambda i: (0, 0)),          # W1 (resident)
                pl.BlockSpec((4, width), lambda i: (0, 0)),               # [b1;gamma;beta;b2]
                pl.BlockSpec((d_hid, d_out), lambda i: (0, 0)),           # W2 (resident)
            ],
            out_specs=pl.BlockSpec((tile_m, pack * d_out), lambda i: (i, 0)),
        ),
        compiler_params=pltpu.CompilerParams(
            dimension_semantics=("parallel",),
            vmem_limit_bytes=vmem_limit,
        ),
    )(x2d, w1, hidp, w2)

    return out2d.reshape(B, S, d_out)


def init_params(key, d_atom, d_hid, d_output, dtype=jnp.float32):
    """Deterministic synthetic parameters matching the PyTorch module's shapes."""
    k1, k2, k3, k4 = jax.random.split(key, 4)
    # nn.Linear stores weight as (out, in); keep the (in, out) transpose so the
    # kernel can do x @ W directly.  Uniform(-1/sqrt(fan_in), 1/sqrt(fan_in)).
    lim1 = 1.0 / (d_atom ** 0.5)
    lim2 = 1.0 / (d_hid ** 0.5)
    return {
        "w1": jax.random.uniform(k1, (d_atom, d_hid), dtype, -lim1, lim1),
        "b1": jax.random.uniform(k2, (d_hid,), dtype, -lim1, lim1),
        "ln_gamma": jnp.ones((d_hid,), dtype),
        "ln_beta": jnp.zeros((d_hid,), dtype),
        "w2": jax.random.uniform(k3, (d_hid, d_output), dtype, -lim2, lim2),
        "b2": jax.random.uniform(k4, (d_output,), dtype, -lim2, lim2),
    }


def _reference(z, p):
    """Pure-JAX reference of the eval-mode forward pass (f32)."""
    h = z @ p["w1"] + p["b1"]
    mu = h.mean(-1, keepdims=True)
    var = ((h - mu) ** 2).mean(-1, keepdims=True)
    h = (h - mu) / jnp.sqrt(var + LN_EPS) * p["ln_gamma"] + p["ln_beta"]
    h = jnp.maximum(h, 0.0)
    return h @ p["w2"] + p["b2"]


if __name__ == "__main__":
    d_atom, d_hid, d_output = 32, 64, 32

    key = jax.random.PRNGKey(0)
    kp, kz, kz2, kz3 = jax.random.split(key, 4)
    params = init_params(kp, d_atom, d_hid, d_output)

    # f32, lane-packed path (row count divisible by 4).
    B, S = 2, 16  # 32 rows -> 8 packed rows
    z = jax.random.normal(kz, (B, S, d_atom), jnp.float32)
    out = jax.block_until_ready(atom_fg_projection(z, params))
    ref = _reference(z, params)
    assert out.shape == (B, S, d_output), out.shape
    assert jnp.allclose(out, ref, atol=1e-4, rtol=1e-4), float(jnp.max(jnp.abs(out - ref)))

    # f32, ragged row count (111 rows): unpacked fallback + Pallas-masked last block.
    B2, S2 = 3, 37
    z2 = jax.random.normal(kz2, (B2, S2, d_atom), jnp.float32)
    out2 = jax.block_until_ready(atom_fg_projection(z2, params))
    ref2 = _reference(z2, params)
    assert out2.shape == (B2, S2, d_output), out2.shape
    assert jnp.allclose(out2, ref2, atol=1e-4, rtol=1e-4), float(jnp.max(jnp.abs(out2 - ref2)))

    # f32, multi-step grid with a partial last block on the packed path.
    B3, S3 = 4, 515  # 2060 rows -> 515 packed rows (not a multiple of the tile)
    z3 = jax.random.normal(kz3, (B3, S3, d_atom), jnp.float32)
    out3 = jax.block_until_ready(atom_fg_projection(z3, params))
    ref3 = _reference(z3, params)
    assert out3.shape == (B3, S3, d_output), out3.shape
    assert jnp.allclose(out3, ref3, atol=1e-4, rtol=1e-4), float(jnp.max(jnp.abs(out3 - ref3)))

    # bf16 path: operands feed the MXU natively; LayerNorm stats stay in f32.
    params_bf = jax.tree_util.tree_map(lambda a: a.astype(jnp.bfloat16), params)
    z_bf = z.astype(jnp.bfloat16)
    out_bf = jax.block_until_ready(atom_fg_projection(z_bf, params_bf))
    params_up = jax.tree_util.tree_map(lambda a: a.astype(jnp.float32), params_bf)
    ref_bf = _reference(z_bf.astype(jnp.float32), params_up)
    assert out_bf.dtype == jnp.bfloat16
    assert jnp.allclose(out_bf.astype(jnp.float32), ref_bf, atol=7e-2, rtol=7e-2), float(
        jnp.max(jnp.abs(out_bf.astype(jnp.float32) - ref_bf)))

    print("KERNEL_OK")
</pallas_src>

<mosaic_0001>
module attributes {stable_mosaic.version = 11 : i64} {
  func.func @_atom_fg_proj_kernel(%arg0: i32, %arg1: memref<8x128xf32, #tpu.memory_space<vmem>>, %arg2: memref<32x64xf32, #tpu.memory_space<vmem>>, %arg3: memref<4x64xf32, #tpu.memory_space<vmem>>, %arg4: memref<64x32xf32, #tpu.memory_space<vmem>>, %arg5: memref<8x128xf32, #tpu.memory_space<vmem>>) attributes {dimension_semantics = [#tpu.dimension_semantics<parallel>], iteration_bounds = array<i64: 1>, scalar_prefetch = 0 : i64, scratch_operands = 0 : i64, tpu.core_type = #tpu.core_type<tc>, window_params = [{transform_indices = @transform_0, window_bounds = array<i64: 8, 128>}, {pipeline_mode = #tpu.pipeline_mode<synchronous>, transform_indices = @transform_1, window_bounds = array<i64: 32, 64>}, {pipeline_mode = #tpu.pipeline_mode<synchronous>, transform_indices = @transform_2, window_bounds = array<i64: 4, 64>}, {pipeline_mode = #tpu.pipeline_mode<synchronous>, transform_indices = @transform_3, window_bounds = array<i64: 64, 32>}, {transform_indices = @transform_4, window_bounds = array<i64: 8, 128>}]} {
    %c0 = arith.constant 0 : index
    %c0_0 = arith.constant 0 : index
    %0 = vector.load %arg2[%c0, %c0_0] : memref<32x64xf32, #tpu.memory_space<vmem>>, vector<32x64xf32>
    %c0_1 = arith.constant 0 : index
    %c0_2 = arith.constant 0 : index
    %1 = vector.load %arg4[%c0_1, %c0_2] : memref<64x32xf32, #tpu.memory_space<vmem>>, vector<64x32xf32>
    %c0_3 = arith.constant 0 : index
    %c0_4 = arith.constant 0 : index
    %2 = vector.load %arg3[%c0_3, %c0_4] : memref<4x64xf32, #tpu.memory_space<vmem>>, vector<4x64xf32>
    %3 = vector.extract_strided_slice %2 {offsets = [0, 0], sizes = [1, 64], strides = [1, 1]} : vector<4x64xf32> to vector<1x64xf32>
    %4 = vector.extract_strided_slice %2 {offsets = [1, 0], sizes = [1, 64], strides = [1, 1]} : vector<4x64xf32> to vector<1x64xf32>
    %5 = vector.extract_strided_slice %2 {offsets = [2, 0], sizes = [1, 64], strides = [1, 1]} : vector<4x64xf32> to vector<1x64xf32>
    %6 = vector.extract_strided_slice %2 {offsets = [3, 0], sizes = [1, 32], strides = [1, 1]} : vector<4x64xf32> to vector<1x32xf32>
    %c0_5 = arith.constant 0 : index
    %c0_6 = arith.constant 0 : index
    %7 = vector.load %arg1[%c0_5, %c0_6] : memref<8x128xf32, #tpu.memory_space<vmem>>, vector<8x32xf32>
    %cst = arith.constant dense<0.000000e+00> : vector<8x64xf32>
    %8 = tpu.matmul %7, %0, %cst {dimension_numbers = #tpu.dot_dimension_numbers<[1], [0], [0], [1], [0, 0, 1, 1], [], []>} : vector<8x32xf32>, vector<32x64xf32>, vector<8x64xf32> -> vector<8x64xf32>
    %9 = vector.broadcast %3 : vector<1x64xf32> to vector<8x64xf32>
    %10 = arith.addf %8, %9 : vector<8x64xf32>
    %cst_7 = arith.constant dense<0.000000e+00> : vector<8xf32>
    %11 = vector.multi_reduction <add>, %10, %cst_7 [1] : vector<8x64xf32> to vector<8xf32>
    %12 = vector.shape_cast %11 : vector<8xf32> to vector<8x1xf32>
    %cst_8 = arith.constant 1.562500e-02 : f32
    %13 = vector.broadcast %cst_8 : f32 to vector<8x1xf32>
    %14 = arith.mulf %12, %13 : vector<8x1xf32>
    %15 = vector.broadcast %14 : vector<8x1xf32> to vector<8x64xf32>
    %16 = arith.subf %10, %15 : vector<8x64xf32>
    %17 = arith.mulf %16, %16 : vector<8x64xf32>
    %cst_9 = arith.constant dense<0.000000e+00> : vector<8xf32>
    %18 = vector.multi_reduction <add>, %17, %cst_9 [1] : vector<8x64xf32> to vector<8xf32>
    %19 = vector.shape_cast %18 : vector<8xf32> to vector<8x1xf32>
    %cst_10 = arith.constant 1.562500e-02 : f32
    %20 = vector.broadcast %cst_10 : f32 to vector<8x1xf32>
    %21 = arith.mulf %19, %20 : vector<8x1xf32>
    %cst_11 = arith.constant 9.99999974E-6 : f32
    %22 = vector.broadcast %cst_11 : f32 to vector<8x1xf32>
    %23 = arith.addf %21, %22 : vector<8x1xf32>
    %24 = math.rsqrt %23 : vector<8x1xf32>
    %25 = vector.broadcast %24 : vector<8x1xf32> to vector<8x64xf32>
    %26 = arith.mulf %16, %25 : vector<8x64xf32>
    %27 = vector.broadcast %4 : vector<1x64xf32> to vector<8x64xf32>
    %28 = arith.mulf %26, %27 : vector<8x64xf32>
    %29 = vector.broadcast %5 : vector<1x64xf32> to vector<8x64xf32>
    %30 = arith.addf %28, %29 : vector<8x64xf32>
    %cst_12 = arith.constant 0.000000e+00 : f32
    %31 = vector.broadcast %cst_12 : f32 to vector<8x64xf32>
    %32 = arith.maximumf %30, %31 : vector<8x64xf32>
    %cst_13 = arith.constant dense<0.000000e+00> : vector<8x32xf32>
    %33 = tpu.matmul %32, %1, %cst_13 {dimension_numbers = #tpu.dot_dimension_numbers<[1], [0], [0], [1], [0, 0, 1, 1], [], []>} : vector<8x64xf32>, vector<64x32xf32>, vector<8x32xf32> -> vector<8x32xf32>
    %34 = vector.broadcast %6 : vector<1x32xf32> to vector<8x32xf32>
    %35 = arith.addf %33, %34 : vector<8x32xf32>
    %c0_14 = arith.constant 0 : index
    %c0_15 = arith.constant 0 : index
    %36 = vector.load %arg5[%c0_14, %c0_15] : memref<8x128xf32, #tpu.memory_space<vmem>>, vector<8x32xf32>
    tpu.vector_store %arg5[%c0_14, %c0_15], %35 {strides = array<i32>} : memref<8x128xf32, #tpu.memory_space<vmem>>, vector<8x32xf32>,
    %c0_16 = arith.constant 0 : index
    %c32 = arith.constant 32 : index
    %37 = vector.load %arg1[%c0_16, %c32] : memref<8x128xf32, #tpu.memory_space<vmem>>, vector<8x32xf32>
    %cst_17 = arith.constant dense<0.000000e+00> : vector<8x64xf32>
    %38 = tpu.matmul %37, %0, %cst_17 {dimension_numbers = #tpu.dot_dimension_numbers<[1], [0], [0], [1], [0, 0, 1, 1], [], []>} : vector<8x32xf32>, vector<32x64xf32>, vector<8x64xf32> -> vector<8x64xf32>
    %39 = vector.broadcast %3 : vector<1x64xf32> to vector<8x64xf32>
    %40 = arith.addf %38, %39 : vector<8x64xf32>
    %cst_18 = arith.constant dense<0.000000e+00> : vector<8xf32>
    %41 = vector.multi_reduction <add>, %40, %cst_18 [1] : vector<8x64xf32> to vector<8xf32>
    %42 = vector.shape_cast %41 : vector<8xf32> to vector<8x1xf32>
    %cst_19 = arith.constant 1.562500e-02 : f32
    %43 = vector.broadcast %cst_19 : f32 to vector<8x1xf32>
    %44 = arith.mulf %42, %43 : vector<8x1xf32>
    %45 = vector.broadcast %44 : vector<8x1xf32> to vector<8x64xf32>
    %46 = arith.subf %40, %45 : vector<8x64xf32>
    %47 = arith.mulf %46, %46 : vector<8x64xf32>
    %cst_20 = arith.constant dense<0.000000e+00> : vector<8xf32>
    %48 = vector.multi_reduction <add>, %47, %cst_20 [1] : vector<8x64xf32> to vector<8xf32>
    %49 = vector.shape_cast %48 : vector<8xf32> to vector<8x1xf32>
    %cst_21 = arith.constant 1.562500e-02 : f32
    %50 = vector.broadcast %cst_21 : f32 to vector<8x1xf32>
    %51 = arith.mulf %49, %50 : vector<8x1xf32>
    %cst_22 = arith.constant 9.99999974E-6 : f32
    %52 = vector.broadcast %cst_22 : f32 to vector<8x1xf32>
    %53 = arith.addf %51, %52 : vector<8x1xf32>
    %54 = math.rsqrt %53 : vector<8x1xf32>
    %55 = vector.broadcast %54 : vector<8x1xf32> to vector<8x64xf32>
    %56 = arith.mulf %46, %55 : vector<8x64xf32>
    %57 = vector.broadcast %4 : vector<1x64xf32> to vector<8x64xf32>
    %58 = arith.mulf %56, %57 : vector<8x64xf32>
    %59 = vector.broadcast %5 : vector<1x64xf32> to vector<8x64xf32>
    %60 = arith.addf %58, %59 : vector<8x64xf32>
    %cst_23 = arith.constant 0.000000e+00 : f32
    %61 = vector.broadcast %cst_23 : f32 to vector<8x64xf32>
    %62 = arith.maximumf %60, %61 : vector<8x64xf32>
    %cst_24 = arith.constant dense<0.000000e+00> : vector<8x32xf32>
    %63 = tpu.matmul %62, %1, %cst_24 {dimension_numbers = #tpu.dot_dimension_numbers<[1], [0], [0], [1], [0, 0, 1, 1], [], []>} : vector<8x64xf32>, vector<64x32xf32>, vector<8x32xf32> -> vector<8x32xf32>
    %64 = vector.broadcast %6 : vector<1x32xf32> to vector<8x32xf32>
    %65 = arith.addf %63, %64 : vector<8x32xf32>
    %c0_25 = arith.constant 0 : index
    %c32_26 = arith.constant 32 : index
    %66 = vector.load %arg5[%c0_25, %c32_26] : memref<8x128xf32, #tpu.memory_space<vmem>>, vector<8x32xf32>
    tpu.vector_store %arg5[%c0_25, %c32_26], %65 {strides = array<i32>} : memref<8x128xf32, #tpu.memory_space<vmem>>, vector<8x32xf32>,
    %c0_27 = arith.constant 0 : index
    %c64 = arith.constant 64 : index
    %67 = vector.load %arg1[%c0_27, %c64] : memref<8x128xf32, #tpu.memory_space<vmem>>, vector<8x32xf32>
    %cst_28 = arith.constant dense<0.000000e+00> : vector<8x64xf32>
    %68 = tpu.matmul %67, %0, %cst_28 {dimension_numbers = #tpu.dot_dimension_numbers<[1], [0], [0], [1], [0, 0, 1, 1], [], []>} : vector<8x32xf32>, vector<32x64xf32>, vector<8x64xf32> -> vector<8x64xf32>
    %69 = vector.broadcast %3 : vector<1x64xf32> to vector<8x64xf32>
    %70 = arith.addf %68, %69 : vector<8x64xf32>
    %cst_29 = arith.constant dense<0.000000e+00> : vector<8xf32>
    %71 = vector.multi_reduction <add>, %70, %cst_29 [1] : vector<8x64xf32> to vector<8xf32>
    %72 = vector.shape_cast %71 : vector<8xf32> to vector<8x1xf32>
    %cst_30 = arith.constant 1.562500e-02 : f32
    %73 = vector.broadcast %cst_30 : f32 to vector<8x1xf32>
    %74 = arith.mulf %72, %73 : vector<8x1xf32>
    %75 = vector.broadcast %74 : vector<8x1xf32> to vector<8x64xf32>
    %76 = arith.subf %70, %75 : vector<8x64xf32>
    %77 = arith.mulf %76, %76 : vector<8x64xf32>
    %cst_31 = arith.constant dense<0.000000e+00> : vector<8xf32>
    %78 = vector.multi_reduction <add>, %77, %cst_31 [1] : vector<8x64xf32> to vector<8xf32>
    %79 = vector.shape_cast %78 : vector<8xf32> to vector<8x1xf32>
    %cst_32 = arith.constant 1.562500e-02 : f32
    %80 = vector.broadcast %cst_32 : f32 to vector<8x1xf32>
    %81 = arith.mulf %79, %80 : vector<8x1xf32>
    %cst_33 = arith.constant 9.99999974E-6 : f32
    %82 = vector.broadcast %cst_33 : f32 to vector<8x1xf32>
    %83 = arith.addf %81, %82 : vector<8x1xf32>
    %84 = math.rsqrt %83 : vector<8x1xf32>
    %85 = vector.broadcast %84 : vector<8x1xf32> to vector<8x64xf32>
    %86 = arith.mulf %76, %85 : vector<8x64xf32>
    %87 = vector.broadcast %4 : vector<1x64xf32> to vector<8x64xf32>
    %88 = arith.mulf %86, %87 : vector<8x64xf32>
    %89 = vector.broadcast %5 : vector<1x64xf32> to vector<8x64xf32>
    %90 = arith.addf %88, %89 : vector<8x64xf32>
    %cst_34 = arith.constant 0.000000e+00 : f32
    %91 = vector.broadcast %cst_34 : f32 to vector<8x64xf32>
    %92 = arith.maximumf %90, %91 : vector<8x64xf32>
    %cst_35 = arith.constant dense<0.000000e+00> : vector<8x32xf32>
    %93 = tpu.matmul %92, %1, %cst_35 {dimension_numbers = #tpu.dot_dimension_numbers<[1], [0], [0], [1], [0, 0, 1, 1], [], []>} : vector<8x64xf32>, vector<64x32xf32>, vector<8x32xf32> -> vector<8x32xf32>
    %94 = vector.broadcast %6 : vector<1x32xf32> to vector<8x32xf32>
    %95 = arith.addf %93, %94 : vector<8x32xf32>
    %c0_36 = arith.constant 0 : index
    %c64_37 = arith.constant 64 : index
    %96 = vector.load %arg5[%c0_36, %c64_37] : memref<8x128xf32, #tpu.memory_space<vmem>>, vector<8x32xf32>
    tpu.vector_store %arg5[%c0_36, %c64_37], %95 {strides = array<i32>} : memref<8x128xf32, #tpu.memory_space<vmem>>, vector<8x32xf32>,
    %c0_38 = arith.constant 0 : index
    %c96 = arith.constant 96 : index
    %97 = vector.load %arg1[%c0_38, %c96] : memref<8x128xf32, #tpu.memory_space<vmem>>, vector<8x32xf32>
    %cst_39 = arith.constant dense<0.000000e+00> : vector<8x64xf32>
    %98 = tpu.matmul %97, %0, %cst_39 {dimension_numbers = #tpu.dot_dimension_numbers<[1], [0], [0], [1], [0, 0, 1, 1], [], []>} : vector<8x32xf32>, vector<32x64xf32>, vector<8x64xf32> -> vector<8x64xf32>
    %99 = vector.broadcast %3 : vector<1x64xf32> to vector<8x64xf32>
    %100 = arith.addf %98, %99 : vector<8x64xf32>
    %cst_40 = arith.constant dense<0.000000e+00> : vector<8xf32>
    %101 = vector.multi_reduction <add>, %100, %cst_40 [1] : vector<8x64xf32> to vector<8xf32>
    %102 = vector.shape_cast %101 : vector<8xf32> to vector<8x1xf32>
    %cst_41 = arith.constant 1.562500e-02 : f32
    %103 = vector.broadcast %cst_41 : f32 to vector<8x1xf32>
    %104 = arith.mulf %102, %103 : vector<8x1xf32>
    %105 = vector.broadcast %104 : vector<8x1xf32> to vector<8x64xf32>
    %106 = arith.subf %100, %105 : vector<8x64xf32>
    %107 = arith.mulf %106, %106 : vector<8x64xf32>
    %cst_42 = arith.constant dense<0.000000e+00> : vector<8xf32>
    %108 = vector.multi_reduction <add>, %107, %cst_42 [1] : vector<8x64xf32> to vector<8xf32>
    %109 = vector.shape_cast %108 : vector<8xf32> to vector<8x1xf32>
    %cst_43 = arith.constant 1.562500e-02 : f32
    %110 = vector.broadcast %cst_43 : f32 to vector<8x1xf32>
    %111 = arith.mulf %109, %110 : vector<8x1xf32>
    %cst_44 = arith.constant 9.99999974E-6 : f32
    %112 = vector.broadcast %cst_44 : f32 to vector<8x1xf32>
    %113 = arith.addf %111, %112 : vector<8x1xf32>
    %114 = math.rsqrt %113 : vector<8x1xf32>
    %115 = vector.broadcast %114 : vector<8x1xf32> to vector<8x64xf32>
    %116 = arith.mulf %106, %115 : vector<8x64xf32>
    %117 = vector.broadcast %4 : vector<1x64xf32> to vector<8x64xf32>
    %118 = arith.mulf %116, %117 : vector<8x64xf32>
    %119 = vector.broadcast %5 : vector<1x64xf32> to vector<8x64xf32>
    %120 = arith.addf %118, %119 : vector<8x64xf32>
    %cst_45 = arith.constant 0.000000e+00 : f32
    %121 = vector.broadcast %cst_45 : f32 to vector<8x64xf32>
    %122 = arith.maximumf %120, %121 : vector<8x64xf32>
    %cst_46 = arith.constant dense<0.000000e+00> : vector<8x32xf32>
    %123 = tpu.matmul %122, %1, %cst_46 {dimension_numbers = #tpu.dot_dimension_numbers<[1], [0], [0], [1], [0, 0, 1, 1], [], []>} : vector<8x64xf32>, vector<64x32xf32>, vector<8x32xf32> -> vector<8x32xf32>
    %124 = vector.broadcast %6 : vector<1x32xf32> to vector<8x32xf32>
    %125 = arith.addf %123, %124 : vector<8x32xf32>
    %c0_47 = arith.constant 0 : index
    %c96_48 = arith.constant 96 : index
    %126 = vector.load %arg5[%c0_47, %c96_48] : memref<8x128xf32, #tpu.memory_space<vmem>>, vector<8x32xf32>
    tpu.vector_store %arg5[%c0_47, %c96_48], %125 {strides = array<i32>} : memref<8x128xf32, #tpu.memory_space<vmem>>, vector<8x32xf32>,
    return
  }
  func.func @transform_0(%arg0: i32) -> (i32, i32) {
    %c0_i32 = arith.constant 0 : i32
    %c0_i32_0 = arith.constant 0 : i32
    return %arg0, %c0_i32 : i32, i32
  }
  func.func @transform_1(%arg0: i32) -> (i32, i32) {
    %c0_i32 = arith.constant 0 : i32
    %c0_i32_0 = arith.constant 0 : i32
    %c0_i32_1 = arith.constant 0 : i32
    return %c0_i32, %c0_i32_0 : i32, i32
  }
  func.func @transform_2(%arg0: i32) -> (i32, i32) {
    %c0_i32 = arith.constant 0 : i32
    %c0_i32_0 = arith.constant 0 : i32
    %c0_i32_1 = arith.constant 0 : i32
    return %c0_i32, %c0_i32_0 : i32, i32
  }
  func.func @transform_3(%arg0: i32) -> (i32, i32) {
    %c0_i32 = arith.constant 0 : i32
    %c0_i32_0 = arith.constant 0 : i32
    %c0_i32_1 = arith.constant 0 : i32
    return %c0_i32, %c0_i32_0 : i32, i32
  }
  func.func @transform_4(%arg0: i32) -> (i32, i32) {
    %c0_i32 = arith.constant 0 : i32
    %c0_i32_0 = arith.constant 0 : i32
    return %arg0, %c0_i32 : i32, i32
  }
}

</mosaic_0001>

<llo_original>
// kernel: atom_fg_projection.1
$region0: #{atom_fg_projection.1}
  #allocation0 [shape = 'u32[]', space=smem, size = 0x4, offset = 0x4, fixed_abs, tag = 'smem constant byte address 0x4 - core index']
  #allocation1 [shape = 'u32[144,128]{1,0:T(1,128)}', space=vmem, size = 0x12000, scoped, tag = 'internal scratch']
  %s0 = inlined_call_operand.hbm [shape: f32[8,128], index: 0, kind: input, shape index: {}]
  %s1 = inlined_call_operand.hbm [shape: f32[32,64], index: 1, kind: input, shape index: {}]
  %s2 = inlined_call_operand.hbm [shape: f32[4,64], index: 2, kind: input, shape index: {}]
  %s3 = inlined_call_operand.hbm [shape: f32[64,32], index: 3, kind: input, shape index: {}]
  %s4 = inlined_call_operand.hbm [shape: f32[8,128], index: 4, kind: output, shape index: {}]
  %s5 = sld [smem:[#allocation0]]
  $region42: #{atom_fg_projection.1} parent=0
    _
  %s7 = ssub.s32 1, %s5
  %s8 = scalar_select 0, %s7, %s5
  $region1: #{atom_fg_projection.1} parent=0
    #allocation2 [shape = 'u8[4096]{0}', space=vmem, size = 0x1000, scoped, tag = 'input window, operand 0, single buffered']
    #allocation3 [shape = 's32[1]{0}', space=sflag, size = 0x4, scoped, tag = 'scoped memory for atom_fg_projection.1']
    #allocation4 [shape = 's32[1]{0}', space=sflag, size = 0x4, scoped, tag = 'scoped memory for atom_fg_projection.1']
    #allocation5 [shape = 'u8[16384]{0}', space=vmem, size = 0x4000, scoped, tag = 'input window, operand 1, single buffered']
    #allocation6 [shape = 's32[1]{0}', space=sflag, size = 0x4, scoped, tag = 'scoped memory for atom_fg_projection.1']
    #allocation7 [shape = 'u8[2048]{0}', space=vmem, size = 0x800, scoped, tag = 'input window, operand 2, single buffered']
    #allocation8 [shape = 'u8[32768]{0}', space=vmem, size = 0x8000, scoped, tag = 'input window, operand 3, single buffered']
    #allocation9 [shape = 's32[1]{0}', space=sflag, size = 0x4, scoped, tag = 'scoped memory for atom_fg_projection.1']
    #allocation10 [shape = 'u8[4096]{0}', space=vmem, size = 0x1000, scoped, tag = 'output window, operand 0, single buffered']
    %9 = vsyncpa [#allocation3], 0
    %10 = vsyncpa [#allocation6], 0
    %11 = vsyncpa [#allocation9], 0
    %12 = vsyncpa [#allocation4], 0
    // Predicated region
    $region2: #{atom_fg_projection.1} parent=1 // pred_check
      _
    $region3: #{atom_fg_projection.1} parent=1 // pred_check_branch
      %14 = sbr.rel (0) target = $region5
    $region4: #{atom_fg_projection.1} parent=1 // pred_region
      %s16 = ssub.s32 128, 128
      %17 = vsyncadd [#allocation3], %s16
      %s19 = sshll.u32 [#allocation2], 4
      %s20 = int_to_ptr.vmem [resolvable:$true] %s19
      %22 = dma.hbm_to_vmem [thread:$0]  %s0, 128, %s20, [#allocation3]
    $region5: #{atom_fg_projection.1} parent=1 // pred_fallthru
      _
    // Predicated region
    $region6: #{atom_fg_projection.1} parent=1 // pred_check
      _
    $region7: #{atom_fg_projection.1} parent=1 // pred_check_branch
      %24 = sbr.rel (0) target = $region9
    $region8: #{atom_fg_projection.1} parent=1 // pred_region
      %s26 = ssub.s32 512, 512
      %27 = vsyncadd [#allocation6], %s26
      %s28 = sshll.u32 [#allocation5], 4
      %s29 = int_to_ptr.vmem [resolvable:$true] %s28
      %34 = dma.hbm_to_vmem [thread:$0]  %s1, 512, %s29, [#allocation6], 128, 128, 8
    $region9: #{atom_fg_projection.1} parent=1 // pred_fallthru
      _
    // Predicated region
    $region10: #{atom_fg_projection.1} parent=1 // pred_check
      _
    $region11: #{atom_fg_projection.1} parent=1 // pred_check_branch
      %36 = sbr.rel (0) target = $region13
    $region12: #{atom_fg_projection.1} parent=1 // pred_region
      %s38 = ssub.s32 64, 64
      %39 = vsyncadd [#allocation6], %s38
      %s41 = sshll.u32 [#allocation7], 4
      %s42 = int_to_ptr.vmem [resolvable:$true] %s41
      %44 = dma.hbm_to_vmem [thread:$0]  %s2, 64, %s42, [#allocation6]
    $region13: #{atom_fg_projection.1} parent=1 // pred_fallthru
      _
    // Predicated region
    $region14: #{atom_fg_projection.1} parent=1 // pred_check
      _
    $region15: #{atom_fg_projection.1} parent=1 // pred_check_branch
      %46 = sbr.rel (0) target = $region17
    $region16: #{atom_fg_projection.1} parent=1 // pred_region
      %s48 = ssub.s32 1024, 1024
      %49 = vsyncadd [#allocation9], %s48
      %s50 = sshll.u32 [#allocation8], 4
      %s51 = int_to_ptr.vmem [resolvable:$true] %s50
      %56 = dma.hbm_to_vmem [thread:$0]  %s3, 1024, %s51, [#allocation9], 128, 128, 8
    $region17: #{atom_fg_projection.1} parent=1 // pred_fallthru
      _
    // Predicated region
    $region18: #{atom_fg_projection.1} parent=1 // pred_check
      _
    $region19: #{atom_fg_projection.1} parent=1 // pred_check_branch
      %58 = sbr.rel (0) target = $region21
    $region20: #{atom_fg_projection.1} parent=1 // pred_region
      %59 = dma.done [#allocation3], 128
    $region21: #{atom_fg_projection.1} parent=1 // pred_fallthru
      _
    // Predicated region
    $region22: #{atom_fg_projection.1} parent=1 // pred_check
      _
    $region23: #{atom_fg_projection.1} parent=1 // pred_check_branch
      %61 = sbr.rel (0) target = $region25
    $region24: #{atom_fg_projection.1} parent=1 // pred_region
      %62 = dma.done [#allocation6], 512
    $region25: #{atom_fg_projection.1} parent=1 // pred_fallthru
      _
    // Predicated region
    $region26: #{atom_fg_projection.1} parent=1 // pred_check
      _
    $region27: #{atom_fg_projection.1} parent=1 // pred_check_branch
      %64 = sbr.rel (0) target = $region29
    $region28: #{atom_fg_projection.1} parent=1 // pred_region
      %65 = dma.done [#allocation6], 64
    $region29: #{atom_fg_projection.1} parent=1 // pred_fallthru
      _
    // Predicated region
    $region30: #{atom_fg_projection.1} parent=1 // pred_check
      _
    $region31: #{atom_fg_projection.1} parent=1 // pred_check_branch
      %67 = sbr.rel (0) target = $region33
    $region32: #{atom_fg_projection.1} parent=1 // pred_region
      %68 = dma.done [#allocation9], 1024
    $region33: #{atom_fg_projection.1} parent=1 // pred_fallthru
      _
    %v69 = vld [vmem:[#allocation5] sm:$0xff]
    %v70 = vld [vmem:[#allocation5 + $0x8] sm:$0xff]
    %v71 = vld [vmem:[#allocation5 + $0x10] sm:$0xff]
    %v72 = vld [vmem:[#allocation5 + $0x18] sm:$0xff]
    %v73 = vld [vmem:[#allocation8] sm:$0xff]
    %v74 = vld [vmem:[#allocation8 + $0x8] sm:$0xff]
    %v75 = vld [vmem:[#allocation8 + $0x10] sm:$0xff]
    %v76 = vld [vmem:[#allocation8 + $0x18] sm:$0xff]
    %v77 = vld [vmem:[#allocation8 + $0x20] sm:$0xff]
    %v78 = vld [vmem:[#allocation8 + $0x28] sm:$0xff]
    %v79 = vld [vmem:[#allocation8 + $0x30] sm:$0xff]
    %v80 = vld [vmem:[#allocation8 + $0x38] sm:$0xff]
    %v81 = vld [vmem:[#allocation7] sm:$0xf]
    %v82 = vld [vmem:[#allocation2] sm:$0xff]
    %v83 = vlaneseq
    %v84 = vshrl.u32 %v83, 7
    %v85 = vsub.s32 0, %v84
    %v86 = vrot.slane %v81, %v85
    %vm87 = vcmask 261120
    %v89 = vsel %vm87, %v82, 0
    %91 = vmatprep.subr.mxu0 0.0
    %92 = vmatpush1.msra.mxu0 %v69
    %93 = vmatprep.subr.mxu0 0.0
    %94 = vmatpush1.msra.mxu0 %v70
    %95 = vmatprep.subr.mxu0 0.0
    %96 = vmatpush1.msra.mxu0 %v71
    %97 = vmatprep.subr.mxu0 0.0
    %98 = vmatpush1.msra.mxu0 %v72
    %99 = vmatprep.subr.mxu0 0.0
    %100 = vmatpush1.msra.mxu0 0.0
    %101 = vmatprep.subr.mxu0 0.0
    %102 = vmatpush1.msra.mxu0 0.0
    %103 = vmatprep.subr.mxu0 0.0
    %104 = vmatpush1.msra.mxu0 0.0
    %105 = vmatprep.subr.mxu0 0.0
    %106 = vmatpush1.msra.mxu0 0.0
    %107 = vmatprep.subr.mxu0 0.0
    %108 = vmatpush1.msra.mxu0 0.0
    %109 = vmatprep.subr.mxu0 0.0
    %110 = vmatpush1.msra.mxu0 0.0
    %111 = vmatprep.subr.mxu0 0.0
    %112 = vmatpush1.msra.mxu0 0.0
    %113 = vmatprep.subr.mxu0 0.0
    %114 = vmatpush1.msra.mxu0 0.0
    %115 = vmatprep.subr.mxu0 0.0
    %116 = vmatpush1.msra.mxu0 0.0
    %117 = vmatprep.subr.mxu0 0.0
    %118 = vmatpush1.msra.mxu0 0.0
    %119 = vmatprep.subr.mxu0 0.0
    %120 = vmatpush1.msra.mxu0 0.0
    %121 = vmatprep.subr.mxu0 0.0
    %122 = vmatpush1.msra.mxu0 0.0
    %123 = vmatprep.subr.mxu0 0.0
    %124 = vmatpush1.msra.mxu0 0.0
    %125 = vmatprep.subr.mxu0 0.0
    %126 = vmatpush1.msra.mxu0 0.0
    %127 = vmatprep.subr.mxu0 0.0
    %128 = vmatpush1.msra.mxu0 0.0
    %129 = vmatprep.subr.mxu0 0.0
    %130 = vmatpush1.msra.mxu0 0.0
    %131 = vmatprep.subr.mxu0 0.0
    %132 = vmatpush1.msra.mxu0 0.0
    %133 = vmatprep.subr.mxu0 0.0
    %134 = vmatpush1.msra.mxu0 0.0
    %135 = vmatprep.subr.mxu0 0.0
    %136 = vmatpush1.msra.mxu0 0.0
    %137 = vmatprep.subr.mxu0 0.0
    %138 = vmatpush1.msra.mxu0 0.0
    %139 = vmatprep.subr.mxu0 0.0
    %140 = vmatpush1.msra.mxu0 0.0
    %141 = vmatprep.subr.mxu0 0.0
    %142 = vmatpush1.msra.mxu0 0.0
    %143 = vmatprep.subr.mxu0 0.0
    %144 = vmatpush1.msra.mxu0 0.0
    %145 = vmatprep.subr.mxu0 0.0
    %146 = vmatpush1.msra.mxu0 0.0
    %147 = vmatprep.subr.mxu0 0.0
    %148 = vmatpush1.msra.mxu0 0.0
    %149 = vmatprep.subr.mxu0 0.0
    %150 = vmatpush1.msra.mxu0 0.0
    %151 = vmatprep.subr.mxu0 0.0
    %152 = vmatpush1.msra.mxu0 0.0
    %153 = vmatprep.subr.mxu0 0.0
    %154 = vmatpush1.msra.mxu0 0.0
    %155 = vmatprep.mubr.f32.mxu0 0.0
    %156 = vmatmul.mubr.f32.gmra.mrb[0].mxu0 %v89
    %v157 = vpop.f32.mrb[0].mxu0
    %v158 = vadd.f32 %v86, %v157
    %v159 = vpop.f32.mrb[0].mxu0
    %160 = vdwg.mxu0
    %vm161 = vcmask 523264
    %v162 = vsel %vm161, %v158, 0.0
    %163 = vadd.xlane.f32.xlu0 %v162
    %v164 = vpop.xlane.xlu0 %163
    %v165 = vmul.f32 %v164, 0.015625
    %v166 = vsub.f32 %v158, %v165
    %v167 = vmul.f32 %v166, %v166
    %v168 = vsel %vm161, %v167, 0.0
    %169 = vadd.xlane.f32.xlu0 %v168
    %v170 = vpop.xlane.xlu0 %169
    %v171 = vmul.f32 %v170, 0.015625
    %v172 = vadd.f32 %v171, 1e-05
    %v173 = vrsqrt.pop %v172
    %v174 = vmul.f32 %v166, %v173
    %v175 = vlaneseq
    %v176 = vshrl.u32 %v175, 7
    %v177 = vsub.s32 1, %v176
    %v178 = vrot.slane %v81, %v177
    %v179 = vmul.f32 %v174, %v178
    %v180 = vlaneseq
    %v181 = vshrl.u32 %v180, 7
    %v182 = vsub.s32 2, %v181
    %v183 = vrot.slane %v81, %v182
    %v184 = vadd.f32 %v179, %v183
    %v185 = vmax.f32 %v184, 0.0
    %v186 = vlaneseq
    %v187 = vshrl.u32 %v186, 7
    %v188 = vsub.s32 3, %v187
    %v189 = vrot.slane %v81, %v188
    %v191 = vsel %vm161, %v185, 0
    %193 = vmatprep.subr.mxu0 0.0
    %194 = vmatpush1.msra.mxu0 %v73
    %195 = vmatprep.subr.mxu0 0.0
    %196 = vmatpush1.msra.mxu0 %v74
    %197 = vmatprep.subr.mxu0 0.0
    %198 = vmatpush1.msra.mxu0 %v75
    %199 = vmatprep.subr.mxu0 0.0
    %200 = vmatpush1.msra.mxu0 %v76
    %201 = vmatprep.subr.mxu0 0.0
    %202 = vmatpush1.msra.mxu0 %v77
    %203 = vmatprep.subr.mxu0 0.0
    %204 = vmatpush1.msra.mxu0 %v78
    %205 = vmatprep.subr.mxu0 0.0
    %206 = vmatpush1.msra.mxu0 %v79
    %207 = vmatprep.subr.mxu0 0.0
    %208 = vmatpush1.msra.mxu0 %v80
    %209 = vmatprep.subr.mxu0 0.0
    %210 = vmatpush1.msra.mxu0 0.0
    %211 = vmatprep.subr.mxu0 0.0
    %212 = vmatpush1.msra.mxu0 0.0
    %213 = vmatprep.subr.mxu0 0.0
    %214 = vmatpush1.msra.mxu0 0.0
    %215 = vmatprep.subr.mxu0 0.0
    %216 = vmatpush1.msra.mxu0 0.0
    %217 = vmatprep.subr.mxu0 0.0
    %218 = vmatpush1.msra.mxu0 0.0
    %219 = vmatprep.subr.mxu0 0.0
    %220 = vmatpush1.msra.mxu0 0.0
    %221 = vmatprep.subr.mxu0 0.0
    %222 = vmatpush1.msra.mxu0 0.0
    %223 = vmatprep.subr.mxu0 0.0
    %224 = vmatpush1.msra.mxu0 0.0
    %225 = vmatprep.subr.mxu0 0.0
    %226 = vmatpush1.msra.mxu0 0.0
    %227 = vmatprep.subr.mxu0 0.0
    %228 = vmatpush1.msra.mxu0 0.0
    %229 = vmatprep.subr.mxu0 0.0
    %230 = vmatpush1.msra.mxu0 0.0
    %231 = vmatprep.subr.mxu0 0.0
    %232 = vmatpush1.msra.mxu0 0.0
    %233 = vmatprep.subr.mxu0 0.0
    %234 = vmatpush1.msra.mxu0 0.0
    %235 = vmatprep.subr.mxu0 0.0
    %236 = vmatpush1.msra.mxu0 0.0
    %237 = vmatprep.subr.mxu0 0.0
    %238 = vmatpush1.msra.mxu0 0.0
    %239 = vmatprep.subr.mxu0 0.0
    %240 = vmatpush1.msra.mxu0 0.0
    %241 = vmatprep.subr.mxu0 0.0
    %242 = vmatpush1.msra.mxu0 0.0
    %243 = vmatprep.subr.mxu0 0.0
    %244 = vmatpush1.msra.mxu0 0.0
    %245 = vmatprep.subr.mxu0 0.0
    %246 = vmatpush1.msra.mxu0 0.0
    %247 = vmatprep.subr.mxu0 0.0
    %248 = vmatpush1.msra.mxu0 0.0
    %249 = vmatprep.subr.mxu0 0.0
    %250 = vmatpush1.msra.mxu0 0.0
    %251 = vmatprep.subr.mxu0 0.0
    %252 = vmatpush1.msra.mxu0 0.0
    %253 = vmatprep.subr.mxu0 0.0
    %254 = vmatpush1.msra.mxu0 0.0
    %255 = vmatprep.subr.mxu0 0.0
    %256 = vmatpush1.msra.mxu0 0.0
    %257 = vmatprep.mubr.f32.mxu0 0.0
    %258 = vmatmul.mubr.f32.gmra.mrb[0].mxu0 %v191
    %v259 = vpop.f32.mrb[0].mxu0
    %v260 = vadd.f32 %v189, %v259
    %v261 = vpop.f32.mrb[0].mxu0
    %262 = vdwg.mxu0
    %263 = vst.msk [vmem:[#allocation10] sm:$0xff] %vm87, %v260
    %v264 = vld [vmem:[#allocation2] sm:$0xff]
    %266 = vrot.lane.b32.xlu0 %v264, 96
    %v267 = vpop.permute.xlu0 %266
    %v268 = vsel %vm87, %v267, 0
    %270 = vmatprep.subr.mxu0 0.0
    %271 = vmatpush1.msra.mxu0 %v69
    %272 = vmatprep.subr.mxu0 0.0
    %273 = vmatpush1.msra.mxu0 %v70
    %274 = vmatprep.subr.mxu0 0.0
    %275 = vmatpush1.msra.mxu0 %v71
    %276 = vmatprep.subr.mxu0 0.0
    %277 = vmatpush1.msra.mxu0 %v72
    %278 = vmatprep.subr.mxu0 0.0
    %279 = vmatpush1.msra.mxu0 0.0
    %280 = vmatprep.subr.mxu0 0.0
    %281 = vmatpush1.msra.mxu0 0.0
    %282 = vmatprep.subr.mxu0 0.0
    %283 = vmatpush1.msra.mxu0 0.0
    %284 = vmatprep.subr.mxu0 0.0
    %285 = vmatpush1.msra.mxu0 0.0
    %286 = vmatprep.subr.mxu0 0.0
    %287 = vmatpush1.msra.mxu0 0.0
    %288 = vmatprep.subr.mxu0 0.0
    %289 = vmatpush1.msra.mxu0 0.0
    %290 = vmatprep.subr.mxu0 0.0
    %291 = vmatpush1.msra.mxu0 0.0
    %292 = vmatprep.subr.mxu0 0.0
    %293 = vmatpush1.msra.mxu0 0.0
    %294 = vmatprep.subr.mxu0 0.0
    %295 = vmatpush1.msra.mxu0 0.0
    %296 = vmatprep.subr.mxu0 0.0
    %297 = vmatpush1.msra.mxu0 0.0
    %298 = vmatprep.subr.mxu0 0.0
    %299 = vmatpush1.msra.mxu0 0.0
    %300 = vmatprep.subr.mxu0 0.0
    %301 = vmatpush1.msra.mxu0 0.0
    %302 = vmatprep.subr.mxu0 0.0
    %303 = vmatpush1.msra.mxu0 0.0
    %304 = vmatprep.subr.mxu0 0.0
    %305 = vmatpush1.msra.mxu0 0.0
    %306 = vmatprep.subr.mxu0 0.0
    %307 = vmatpush1.msra.mxu0 0.0
    %308 = vmatprep.subr.mxu0 0.0
    %309 = vmatpush1.msra.mxu0 0.0
    %310 = vmatprep.subr.mxu0 0.0
    %311 = vmatpush1.msra.mxu0 0.0
    %312 = vmatprep.subr.mxu0 0.0
    %313 = vmatpush1.msra.mxu0 0.0
    %314 = vmatprep.subr.mxu0 0.0
    %315 = vmatpush1.msra.mxu0 0.0
    %316 = vmatprep.subr.mxu0 0.0
    %317 = vmatpush1.msra.mxu0 0.0
    %318 = vmatprep.subr.mxu0 0.0
    %319 = vmatpush1.msra.mxu0 0.0
    %320 = vmatprep.subr.mxu0 0.0
    %321 = vmatpush1.msra.mxu0 0.0
    %322 = vmatprep.subr.mxu0 0.0
    %323 = vmatpush1.msra.mxu0 0.0
    %324 = vmatprep.subr.mxu0 0.0
    %325 = vmatpush1.msra.mxu0 0.0
    %326 = vmatprep.subr.mxu0 0.0
    %327 = vmatpush1.msra.mxu0 0.0
    %328 = vmatprep.subr.mxu0 0.0
    %329 = vmatpush1.msra.mxu0 0.0
    %330 = vmatprep.subr.mxu0 0.0
    %331 = vmatpush1.msra.mxu0 0.0
    %332 = vmatprep.subr.mxu0 0.0
    %333 = vmatpush1.msra.mxu0 0.0
    %334 = vmatprep.mubr.f32.mxu0 0.0
    %335 = vmatmul.mubr.f32.gmra.mrb[0].mxu0 %v268
    %v336 = vpop.f32.mrb[0].mxu0
    %v337 = vadd.f32 %v86, %v336
    %v338 = vpop.f32.mrb[0].mxu0
    %339 = vdwg.mxu0
    %v340 = vsel %vm161, %v337, 0.0
    %341 = vadd.xlane.f32.xlu0 %v340
    %v342 = vpop.xlane.xlu0 %341
    %v343 = vmul.f32 %v342, 0.015625
    %v344 = vsub.f32 %v337, %v343
    %v345 = vmul.f32 %v344, %v344
    %v346 = vsel %vm161, %v345, 0.0
    %347 = vadd.xlane.f32.xlu0 %v346
    %v348 = vpop.xlane.xlu0 %347
    %v349 = vmul.f32 %v348, 0.015625
    %v350 = vadd.f32 %v349, 1e-05
    %v351 = vrsqrt.pop %v350
    %v352 = vmul.f32 %v344, %v351
    %v353 = vmul.f32 %v352, %v178
    %v354 = vadd.f32 %v353, %v183
    %v355 = vmax.f32 %v354, 0.0
    %v357 = vsel %vm161, %v355, 0
    %359 = vmatprep.subr.mxu0 0.0
    %360 = vmatpush1.msra.mxu0 %v73
    %361 = vmatprep.subr.mxu0 0.0
    %362 = vmatpush1.msra.mxu0 %v74
    %363 = vmatprep.subr.mxu0 0.0
    %364 = vmatpush1.msra.mxu0 %v75
    %365 = vmatprep.subr.mxu0 0.0
    %366 = vmatpush1.msra.mxu0 %v76
    %367 = vmatprep.subr.mxu0 0.0
    %368 = vmatpush1.msra.mxu0 %v77
    %369 = vmatprep.subr.mxu0 0.0
    %370 = vmatpush1.msra.mxu0 %v78
    %371 = vmatprep.subr.mxu0 0.0
    %372 = vmatpush1.msra.mxu0 %v79
    %373 = vmatprep.subr.mxu0 0.0
    %374 = vmatpush1.msra.mxu0 %v80
    %375 = vmatprep.subr.mxu0 0.0
    %376 = vmatpush1.msra.mxu0 0.0
    %377 = vmatprep.subr.mxu0 0.0
    %378 = vmatpush1.msra.mxu0 0.0
    %379 = vmatprep.subr.mxu0 0.0
    %380 = vmatpush1.msra.mxu0 0.0
    %381 = vmatprep.subr.mxu0 0.0
    %382 = vmatpush1.msra.mxu0 0.0
    %383 = vmatprep.subr.mxu0 0.0
    %384 = vmatpush1.msra.mxu0 0.0
    %385 = vmatprep.subr.mxu0 0.0
    %386 = vmatpush1.msra.mxu0 0.0
    %387 = vmatprep.subr.mxu0 0.0
    %388 = vmatpush1.msra.mxu0 0.0
    %389 = vmatprep.subr.mxu0 0.0
    %390 = vmatpush1.msra.mxu0 0.0
    %391 = vmatprep.subr.mxu0 0.0
    %392 = vmatpush1.msra.mxu0 0.0
    %393 = vmatprep.subr.mxu0 0.0
    %394 = vmatpush1.msra.mxu0 0.0
    %395 = vmatprep.subr.mxu0 0.0
    %396 = vmatpush1.msra.mxu0 0.0
    %397 = vmatprep.subr.mxu0 0.0
    %398 = vmatpush1.msra.mxu0 0.0
    %399 = vmatprep.subr.mxu0 0.0
    %400 = vmatpush1.msra.mxu0 0.0
    %401 = vmatprep.subr.mxu0 0.0
    %402 = vmatpush1.msra.mxu0 0.0
    %403 = vmatprep.subr.mxu0 0.0
    %404 = vmatpush1.msra.mxu0 0.0
    %405 = vmatprep.subr.mxu0 0.0
    %406 = vmatpush1.msra.mxu0 0.0
    %407 = vmatprep.subr.mxu0 0.0
    %408 = vmatpush1.msra.mxu0 0.0
    %409 = vmatprep.subr.mxu0 0.0
    %410 = vmatpush1.msra.mxu0 0.0
    %411 = vmatprep.subr.mxu0 0.0
    %412 = vmatpush1.msra.mxu0 0.0
    %413 = vmatprep.subr.mxu0 0.0
    %414 = vmatpush1.msra.mxu0 0.0
    %415 = vmatprep.subr.mxu0 0.0
    %416 = vmatpush1.msra.mxu0 0.0
    %417 = vmatprep.subr.mxu0 0.0
    %418 = vmatpush1.msra.mxu0 0.0
    %419 = vmatprep.subr.mxu0 0.0
    %420 = vmatpush1.msra.mxu0 0.0
    %421 = vmatprep.subr.mxu0 0.0
    %422 = vmatpush1.msra.mxu0 0.0
    %423 = vmatprep.mubr.f32.mxu0 0.0
    %424 = vmatmul.mubr.f32.gmra.mrb[0].mxu0 %v357
    %v425 = vpop.f32.mrb[0].mxu0
    %v426 = vadd.f32 %v189, %v425
    %v427 = vpop.f32.mrb[0].mxu0
    %428 = vdwg.mxu0
    %430 = vrot.lane.b32.xlu0 %v426, 32
    %v431 = vpop.permute.xlu0 %430
    %vm433 = vcmask 523520
    %434 = vst.msk [vmem:[#allocation10] sm:$0xff] %vm433, %v431
    %v435 = vld [vmem:[#allocation2] sm:$0xff]
    %437 = vrot.lane.b32.xlu0 %v435, 64
    %v438 = vpop.permute.xlu0 %437
    %v439 = vsel %vm87, %v438, 0
    %441 = vmatprep.subr.mxu0 0.0
    %442 = vmatpush1.msra.mxu0 %v69
    %443 = vmatprep.subr.mxu0 0.0
    %444 = vmatpush1.msra.mxu0 %v70
    %445 = vmatprep.subr.mxu0 0.0
    %446 = vmatpush1.msra.mxu0 %v71
    %447 = vmatprep.subr.mxu0 0.0
    %448 = vmatpush1.msra.mxu0 %v72
    %449 = vmatprep.subr.mxu0 0.0
    %450 = vmatpush1.msra.mxu0 0.0
    %451 = vmatprep.subr.mxu0 0.0
    %452 = vmatpush1.msra.mxu0 0.0
    %453 = vmatprep.subr.mxu0 0.0
    %454 = vmatpush1.msra.mxu0 0.0
    %455 = vmatprep.subr.mxu0 0.0
    %456 = vmatpush1.msra.mxu0 0.0
    %457 = vmatprep.subr.mxu0 0.0
    %458 = vmatpush1.msra.mxu0 0.0
    %459 = vmatprep.subr.mxu0 0.0
    %460 = vmatpush1.msra.mxu0 0.0
    %461 = vmatprep.subr.mxu0 0.0
    %462 = vmatpush1.msra.mxu0 0.0
    %463 = vmatprep.subr.mxu0 0.0
    %464 = vmatpush1.msra.mxu0 0.0
    %465 = vmatprep.subr.mxu0 0.0
    %466 = vmatpush1.msra.mxu0 0.0
    %467 = vmatprep.subr.mxu0 0.0
    %468 = vmatpush1.msra.mxu0 0.0
    %469 = vmatprep.subr.mxu0 0.0
    %470 = vmatpush1.msra.mxu0 0.0
    %471 = vmatprep.subr.mxu0 0.0
    %472 = vmatpush1.msra.mxu0 0.0
    %473 = vmatprep.subr.mxu0 0.0
    %474 = vmatpush1.msra.mxu0 0.0
    %475 = vmatprep.subr.mxu0 0.0
    %476 = vmatpush1.msra.mxu0 0.0
    %477 = vmatprep.subr.mxu0 0.0
    %478 = vmatpush1.msra.mxu0 0.0
    %479 = vmatprep.subr.mxu0 0.0
    %480 = vmatpush1.msra.mxu0 0.0
    %481 = vmatprep.subr.mxu0 0.0
    %482 = vmatpush1.msra.mxu0 0.0
    %483 = vmatprep.subr.mxu0 0.0
    %484 = vmatpush1.msra.mxu0 0.0
    %485 = vmatprep.subr.mxu0 0.0
    %486 = vmatpush1.msra.mxu0 0.0
    %487 = vmatprep.subr.mxu0 0.0
    %488 = vmatpush1.msra.mxu0 0.0
    %489 = vmatprep.subr.mxu0 0.0
    %490 = vmatpush1.msra.mxu0 0.0
    %491 = vmatprep.subr.mxu0 0.0
    %492 = vmatpush1.msra.mxu0 0.0
    %493 = vmatprep.subr.mxu0 0.0
    %494 = vmatpush1.msra.mxu0 0.0
    %495 = vmatprep.subr.mxu0 0.0
    %496 = vmatpush1.msra.mxu0 0.0
    %497 = vmatprep.subr.mxu0 0.0
    %498 = vmatpush1.msra.mxu0 0.0
    %499 = vmatprep.subr.mxu0 0.0
    %500 = vmatpush1.msra.mxu0 0.0
    %501 = vmatprep.subr.mxu0 0.0
    %502 = vmatpush1.msra.mxu0 0.0
    %503 = vmatprep.subr.mxu0 0.0
    %504 = vmatpush1.msra.mxu0 0.0
    %505 = vmatprep.mubr.f32.mxu0 0.0
    %506 = vmatmul.mubr.f32.gmra.mrb[0].mxu0 %v439
    %v507 = vpop.f32.mrb[0].mxu0
    %v508 = vadd.f32 %v86, %v507
    %v509 = vpop.f32.mrb[0].mxu0
    %510 = vdwg.mxu0
    %v511 = vsel %vm161, %v508, 0.0
    %512 = vadd.xlane.f32.xlu0 %v511
    %v513 = vpop.xlane.xlu0 %512
    %v514 = vmul.f32 %v513, 0.015625
    %v515 = vsub.f32 %v508, %v514
    %v516 = vmul.f32 %v515, %v515
    %v517 = vsel %vm161, %v516, 0.0
    %518 = vadd.xlane.f32.xlu0 %v517
    %v519 = vpop.xlane.xlu0 %518
    %v520 = vmul.f32 %v519, 0.015625
    %v521 = vadd.f32 %v520, 1e-05
    %v522 = vrsqrt.pop %v521
    %v523 = vmul.f32 %v515, %v522
    %v524 = vmul.f32 %v523, %v178
    %v525 = vadd.f32 %v524, %v183
    %v526 = vmax.f32 %v525, 0.0
    %v528 = vsel %vm161, %v526, 0
    %530 = vmatprep.subr.mxu0 0.0
    %531 = vmatpush1.msra.mxu0 %v73
    %532 = vmatprep.subr.mxu0 0.0
    %533 = vmatpush1.msra.mxu0 %v74
    %534 = vmatprep.subr.mxu0 0.0
    %535 = vmatpush1.msra.mxu0 %v75
    %536 = vmatprep.subr.mxu0 0.0
    %537 = vmatpush1.msra.mxu0 %v76
    %538 = vmatprep.subr.mxu0 0.0
    %539 = vmatpush1.msra.mxu0 %v77
    %540 = vmatprep.subr.mxu0 0.0
    %541 = vmatpush1.msra.mxu0 %v78
    %542 = vmatprep.subr.mxu0 0.0
    %543 = vmatpush1.msra.mxu0 %v79
    %544 = vmatprep.subr.mxu0 0.0
    %545 = vmatpush1.msra.mxu0 %v80
    %546 = vmatprep.subr.mxu0 0.0
    %547 = vmatpush1.msra.mxu0 0.0
    %548 = vmatprep.subr.mxu0 0.0
    %549 = vmatpush1.msra.mxu0 0.0
    %550 = vmatprep.subr.mxu0 0.0
    %551 = vmatpush1.msra.mxu0 0.0
    %552 = vmatprep.subr.mxu0 0.0
    %553 = vmatpush1.msra.mxu0 0.0
    %554 = vmatprep.subr.mxu0 0.0
    %555 = vmatpush1.msra.mxu0 0.0
    %556 = vmatprep.subr.mxu0 0.0
    %557 = vmatpush1.msra.mxu0 0.0
    %558 = vmatprep.subr.mxu0 0.0
    %559 = vmatpush1.msra.mxu0 0.0
    %560 = vmatprep.subr.mxu0 0.0
    %561 = vmatpush1.msra.mxu0 0.0
    %562 = vmatprep.subr.mxu0 0.0
    %563 = vmatpush1.msra.mxu0 0.0
    %564 = vmatprep.subr.mxu0 0.0
    %565 = vmatpush1.msra.mxu0 0.0
    %566 = vmatprep.subr.mxu0 0.0
    %567 = vmatpush1.msra.mxu0 0.0
    %568 = vmatprep.subr.mxu0 0.0
    %569 = vmatpush1.msra.mxu0 0.0
    %570 = vmatprep.subr.mxu0 0.0
    %571 = vmatpush1.msra.mxu0 0.0
    %572 = vmatprep.subr.mxu0 0.0
    %573 = vmatpush1.msra.mxu0 0.0
    %574 = vmatprep.subr.mxu0 0.0
    %575 = vmatpush1.msra.mxu0 0.0
    %576 = vmatprep.subr.mxu0 0.0
    %577 = vmatpush1.msra.mxu0 0.0
    %578 = vmatprep.subr.mxu0 0.0
    %579 = vmatpush1.msra.mxu0 0.0
    %580 = vmatprep.subr.mxu0 0.0
    %581 = vmatpush1.msra.mxu0 0.0
    %582 = vmatprep.subr.mxu0 0.0
    %583 = vmatpush1.msra.mxu0 0.0
    %584 = vmatprep.subr.mxu0 0.0
    %585 = vmatpush1.msra.mxu0 0.0
    %586 = vmatprep.subr.mxu0 0.0
    %587 = vmatpush1.msra.mxu0 0.0
    %588 = vmatprep.subr.mxu0 0.0
    %589 = vmatpush1.msra.mxu0 0.0
    %590 = vmatprep.subr.mxu0 0.0
    %591 = vmatpush1.msra.mxu0 0.0
    %592 = vmatprep.subr.mxu0 0.0
    %593 = vmatpush1.msra.mxu0 0.0
    %594 = vmatprep.mubr.f32.mxu0 0.0
    %595 = vmatmul.mubr.f32.gmra.mrb[0].mxu0 %v528
    %v596 = vpop.f32.mrb[0].mxu0
    %v597 = vadd.f32 %v189, %v596
    %v598 = vpop.f32.mrb[0].mxu0
    %599 = vdwg.mxu0
    %601 = vrot.lane.b32.xlu0 %v597, 64
    %v602 = vpop.permute.xlu0 %601
    %vm604 = vcmask 785920
    %605 = vst.msk [vmem:[#allocation10] sm:$0xff] %vm604, %v602
    %v606 = vld [vmem:[#allocation2] sm:$0xff]
    %608 = vrot.lane.b32.xlu0 %v606, 32
    %v609 = vpop.permute.xlu0 %608
    %v610 = vsel %vm87, %v609, 0
    %612 = vmatprep.subr.mxu0 0.0
    %613 = vmatpush1.msra.mxu0 %v69
    %614 = vmatprep.subr.mxu0 0.0
    %615 = vmatpush1.msra.mxu0 %v70
    %616 = vmatprep.subr.mxu0 0.0
    %617 = vmatpush1.msra.mxu0 %v71
    %618 = vmatprep.subr.mxu0 0.0
    %619 = vmatpush1.msra.mxu0 %v72
    %620 = vmatprep.subr.mxu0 0.0
    %621 = vmatpush1.msra.mxu0 0.0
    %622 = vmatprep.subr.mxu0 0.0
    %623 = vmatpush1.msra.mxu0 0.0
    %624 = vmatprep.subr.mxu0 0.0
    %625 = vmatpush1.msra.mxu0 0.0
    %626 = vmatprep.subr.mxu0 0.0
    %627 = vmatpush1.msra.mxu0 0.0
    %628 = vmatprep.subr.mxu0 0.0
    %629 = vmatpush1.msra.mxu0 0.0
    %630 = vmatprep.subr.mxu0 0.0
    %631 = vmatpush1.msra.mxu0 0.0
    %632 = vmatprep.subr.mxu0 0.0
    %633 = vmatpush1.msra.mxu0 0.0
    %634 = vmatprep.subr.mxu0 0.0
    %635 = vmatpush1.msra.mxu0 0.0
    %636 = vmatprep.subr.mxu0 0.0
    %637 = vmatpush1.msra.mxu0 0.0
    %638 = vmatprep.subr.mxu0 0.0
    %639 = vmatpush1.msra.mxu0 0.0
    %640 = vmatprep.subr.mxu0 0.0
    %641 = vmatpush1.msra.mxu0 0.0
    %642 = vmatprep.subr.mxu0 0.0
    %643 = vmatpush1.msra.mxu0 0.0
    %644 = vmatprep.subr.mxu0 0.0
    %645 = vmatpush1.msra.mxu0 0.0
    %646 = vmatprep.subr.mxu0 0.0
    %647 = vmatpush1.msra.mxu0 0.0
    %648 = vmatprep.subr.mxu0 0.0
    %649 = vmatpush1.msra.mxu0 0.0
    %650 = vmatprep.subr.mxu0 0.0
    %651 = vmatpush1.msra.mxu0 0.0
    %652 = vmatprep.subr.mxu0 0.0
    %653 = vmatpush1.msra.mxu0 0.0
    %654 = vmatprep.subr.mxu0 0.0
    %655 = vmatpush1.msra.mxu0 0.0
    %656 = vmatprep.subr.mxu0 0.0
    %657 = vmatpush1.msra.mxu0 0.0
    %658 = vmatprep.subr.mxu0 0.0
    %659 = vmatpush1.msra.mxu0 0.0
    %660 = vmatprep.subr.mxu0 0.0
    %661 = vmatpush1.msra.mxu0 0.0
    %662 = vmatprep.subr.mxu0 0.0
    %663 = vmatpush1.msra.mxu0 0.0
    %664 = vmatprep.subr.mxu0 0.0
    %665 = vmatpush1.msra.mxu0 0.0
    %666 = vmatprep.subr.mxu0 0.0
    %667 = vmatpush1.msra.mxu0 0.0
    %668 = vmatprep.subr.mxu0 0.0
    %669 = vmatpush1.msra.mxu0 0.0
    %670 = vmatprep.subr.mxu0 0.0
    %671 = vmatpush1.msra.mxu0 0.0
    %672 = vmatprep.subr.mxu0 0.0
    %673 = vmatpush1.msra.mxu0 0.0
    %674 = vmatprep.subr.mxu0 0.0
    %675 = vmatpush1.msra.mxu0 0.0
    %676 = vmatprep.mubr.f32.mxu0 0.0
    %677 = vmatmul.mubr.f32.gmra.mrb[0].mxu0 %v610
    %v678 = vpop.f32.mrb[0].mxu0
    %v679 = vadd.f32 %v86, %v678
    %v680 = vpop.f32.mrb[0].mxu0
    %681 = vdwg.mxu0
    %v682 = vsel %vm161, %v679, 0.0
    %683 = vadd.xlane.f32.xlu0 %v682
    %v684 = vpop.xlane.xlu0 %683
    %v685 = vmul.f32 %v684, 0.015625
    %v686 = vsub.f32 %v679, %v685
    %v687 = vmul.f32 %v686, %v686
    %v688 = vsel %vm161, %v687, 0.0
    %689 = vadd.xlane.f32.xlu0 %v688
    %v690 = vpop.xlane.xlu0 %689
    %v691 = vmul.f32 %v690, 0.015625
    %v692 = vadd.f32 %v691, 1e-05
    %v693 = vrsqrt.pop %v692
    %v694 = vmul.f32 %v686, %v693
    %v695 = vmul.f32 %v694, %v178
    %v696 = vadd.f32 %v695, %v183
    %v697 = vmax.f32 %v696, 0.0
    %v699 = vsel %vm161, %v697, 0
    %701 = vmatprep.subr.mxu0 0.0
    %702 = vmatpush1.msra.mxu0 %v73
    %703 = vmatprep.subr.mxu0 0.0
    %704 = vmatpush1.msra.mxu0 %v74
    %705 = vmatprep.subr.mxu0 0.0
    %706 = vmatpush1.msra.mxu0 %v75
    %707 = vmatprep.subr.mxu0 0.0
    %708 = vmatpush1.msra.mxu0 %v76
    %709 = vmatprep.subr.mxu0 0.0
    %710 = vmatpush1.msra.mxu0 %v77
    %711 = vmatprep.subr.mxu0 0.0
    %712 = vmatpush1.msra.mxu0 %v78
    %713 = vmatprep.subr.mxu0 0.0
    %714 = vmatpush1.msra.mxu0 %v79
    %715 = vmatprep.subr.mxu0 0.0
    %716 = vmatpush1.msra.mxu0 %v80
    %717 = vmatprep.subr.mxu0 0.0
    %718 = vmatpush1.msra.mxu0 0.0
    %719 = vmatprep.subr.mxu0 0.0
    %720 = vmatpush1.msra.mxu0 0.0
    %721 = vmatprep.subr.mxu0 0.0
    %722 = vmatpush1.msra.mxu0 0.0
    %723 = vmatprep.subr.mxu0 0.0
    %724 = vmatpush1.msra.mxu0 0.0
    %725 = vmatprep.subr.mxu0 0.0
    %726 = vmatpush1.msra.mxu0 0.0
    %727 = vmatprep.subr.mxu0 0.0
    %728 = vmatpush1.msra.mxu0 0.0
    %729 = vmatprep.subr.mxu0 0.0
    %730 = vmatpush1.msra.mxu0 0.0
    %731 = vmatprep.subr.mxu0 0.0
    %732 = vmatpush1.msra.mxu0 0.0
    %733 = vmatprep.subr.mxu0 0.0
    %734 = vmatpush1.msra.mxu0 0.0
    %735 = vmatprep.subr.mxu0 0.0
    %736 = vmatpush1.msra.mxu0 0.0
    %737 = vmatprep.subr.mxu0 0.0
    %738 = vmatpush1.msra.mxu0 0.0
    %739 = vmatprep.subr.mxu0 0.0
    %740 = vmatpush1.msra.mxu0 0.0
    %741 = vmatprep.subr.mxu0 0.0
    %742 = vmatpush1.msra.mxu0 0.0
    %743 = vmatprep.subr.mxu0 0.0
    %744 = vmatpush1.msra.mxu0 0.0
    %745 = vmatprep.subr.mxu0 0.0
    %746 = vmatpush1.msra.mxu0 0.0
    %747 = vmatprep.subr.mxu0 0.0
    %748 = vmatpush1.msra.mxu0 0.0
    %749 = vmatprep.subr.mxu0 0.0
    %750 = vmatpush1.msra.mxu0 0.0
    %751 = vmatprep.subr.mxu0 0.0
    %752 = vmatpush1.msra.mxu0 0.0
    %753 = vmatprep.subr.mxu0 0.0
    %754 = vmatpush1.msra.mxu0 0.0
    %755 = vmatprep.subr.mxu0 0.0
    %756 = vmatpush1.msra.mxu0 0.0
    %757 = vmatprep.subr.mxu0 0.0
    %758 = vmatpush1.msra.mxu0 0.0
    %759 = vmatprep.subr.mxu0 0.0
    %760 = vmatpush1.msra.mxu0 0.0
    %761 = vmatprep.subr.mxu0 0.0
    %762 = vmatpush1.msra.mxu0 0.0
    %763 = vmatprep.subr.mxu0 0.0
    %764 = vmatpush1.msra.mxu0 0.0
    %765 = vmatprep.mubr.f32.mxu0 0.0
    %766 = vmatmul.mubr.f32.gmra.mrb[0].mxu0 %v699
    %v767 = vpop.f32.mrb[0].mxu0
    %v768 = vadd.f32 %v189, %v767
    %v769 = vpop.f32.mrb[0].mxu0
    %770 = vdwg.mxu0
    %772 = vrot.lane.b32.xlu0 %v768, 96
    %v773 = vpop.permute.xlu0 %772
    %vm775 = vcmask 1048320
    %776 = vst.msk [vmem:[#allocation10] sm:$0xff] %vm775, %v773
    // Predicated region
    $region34: #{atom_fg_projection.1} parent=1 // pred_check
      _
    $region35: #{atom_fg_projection.1} parent=1 // pred_check_branch
      %778 = sbr.rel (0) target = $region37
    $region36: #{atom_fg_projection.1} parent=1 // pred_region
      %s780 = ssub.s32 128, 128
      %781 = vsyncadd [#allocation4], %s780
      %s783 = sshll.u32 [#allocation10], 4
      %s784 = int_to_ptr.vmem [resolvable:$true] %s783
      %786 = dma.vmem_to_hbm [thread:$0]  %s784, 128, %s4, [#allocation4]
    $region37: #{atom_fg_projection.1} parent=1 // pred_fallthru
      _
    // Predicated region
    $region38: #{atom_fg_projection.1} parent=1 // pred_check
      _
    $region39: #{atom_fg_projection.1} parent=1 // pred_check_branch
      %788 = sbr.rel (0) target = $region41
    $region40: #{atom_fg_projection.1} parent=1 // pred_region
      %789 = dma.done [#allocation4], 128
    $region41: #{atom_fg_projection.1} parent=1 // pred_fallthru
      _
    %790 = vsyncpa [#allocation3], 1
    %791 = vsyncpa [#allocation6], 1
    %792 = vsyncpa [#allocation9], 1
    %793 = vsyncpa [#allocation4], 1

</llo_original>
